<compile_context>
chip_gen: v7x
topology: tpu7x:2x2x1
jax: 0.10.0
libtpu: 0.0.40
codegen_flags: <defaults>
</compile_context>

<pallas_src>
import functools

import jax
import jax.numpy as jnp
from jax.experimental import pallas as pl
from jax.experimental.pallas import tpu as pltpu


def _round_up(n, m):
    return ((n + m - 1) // m) * m


def _double_conv_kernel(x_ref, w1_ref, b1_ref, w2_ref, b2_ref, m_ref, o_ref,
                        *, width):
    # x_ref : (1, Cin_p, HW)      channels-major, lane-flattened input
    # w1_ref: (Cmid_p, 9*Cin_p)   fused conv1 weights (tap-major K blocks)
    # b1_ref: (Cmid_p, 1)
    # w2_ref: (Cout, 9*Cmid_p)    fused conv2 weights
    # b2_ref: (Cout, 1)
    # m_ref : (9, HW)             {0,1} SAME-padding validity mask per tap
    # o_ref : (1, Cout, HW)
    x = x_ref[0]                       # (Cin_p, HW) f32
    hw = x.shape[1]
    masks = m_ref[...]                 # (9, HW) f32

    def im2col(a):
        # a: (C, HW) -> (9*C, HW).  Tap order must match _tap_masks and the
        # weight-fusing helper: (dy, dx) = (-1,-1), (-1,0), ..., (1,1).
        slabs = []
        t = 0
        for dy in (-1, 0, 1):
            for dx in (-1, 0, 1):
                off = dy * width + dx
                if off == 0:
                    slabs.append(a)
                else:
                    # result[:, p] = a[:, p + off]  (lane rotation on the XLU),
                    # then zero positions whose source fell outside the image.
                    rolled = pltpu.roll(a, shift=(-off) % hw, axis=1)
                    slabs.append(rolled * masks[t:t + 1, :])
                t += 1
        return jnp.concatenate(slabs, axis=0)

    # conv1 + ReLU : one (Cmid_p, 9*Cin_p) x (9*Cin_p, HW) MXU matmul.
    h = jnp.dot(w1_ref[...], im2col(x), preferred_element_type=jnp.float32)
    h = jnp.maximum(h + b1_ref[...], 0.0)          # (Cmid_p, HW)

    # conv2 + ReLU : one (Cout, 9*Cmid_p) x (9*Cmid_p, HW) MXU matmul.
    out = jnp.dot(w2_ref[...], im2col(h), preferred_element_type=jnp.float32)
    out = jnp.maximum(out + b2_ref[...], 0.0)      # (Cout, HW)

    o_ref[0] = out.astype(o_ref.dtype)             # lane-dense (256-wide) store


def _fuse_conv3x3_weights(w_oihw, cin_pad, cout_pad):
    """(Cout, Cin, 3, 3) OIHW -> (cout_pad, 9*cin_pad) fused matmul weights.

    Column block t (width cin_pad) holds the weights of tap t, taps ordered
    (dy, dx) = (-1,-1), (-1,0), ..., (1,1) to match the kernel's im2col rows.
    Padded rows/columns are zero, so channel padding never changes the result.
    """
    co, ci, kh, kw = w_oihw.shape
    w = jnp.transpose(w_oihw, (2, 3, 0, 1)).reshape(kh * kw, co, ci)   # (9,Co,Ci)
    w = jnp.pad(w, ((0, 0), (0, cout_pad - co), (0, cin_pad - ci)))
    return jnp.transpose(w, (1, 0, 2)).reshape(cout_pad, kh * kw * cin_pad)


def _tap_masks(H, W):
    """(9, H*W) {0,1} masks: mask[t, y*W + x] = 1 iff (y+dy, x+dx) is in-bounds."""
    y = jnp.repeat(jnp.arange(H), W)
    x = jnp.tile(jnp.arange(W), H)
    rows = []
    for dy in (-1, 0, 1):
        for dx in (-1, 0, 1):
            valid = ((y + dy >= 0) & (y + dy < H) &
                     (x + dx >= 0) & (x + dx < W))
            rows.append(valid.astype(jnp.float32))
    return jnp.stack(rows, axis=0)


def double_conv(x_nchw, w1, b1, w2, b2):
    """Pallas DoubleConv.

    x_nchw: (N, Cin, H, W) f32; w1: (Cmid, Cin, 3, 3) OIHW; b1: (Cmid,);
    w2: (Cout, Cmid, 3, 3) OIHW; b2: (Cout,).  Returns (N, Cout, H, W).
    """
    N, Cin, H, W = x_nchw.shape
    Cmid = w1.shape[0]
    Cout = w2.shape[0]
    HW = H * W
    Cin_p = _round_up(Cin, 8)     # pad channel (sublane) dims to the 8-sublane tile
    Cmid_p = _round_up(Cmid, 8)

    # NCHW -> (N, Cin_p, H*W): channels-major + lane-dense; reshape + zero-pad only.
    x = x_nchw.reshape(N, Cin, HW)
    if Cin_p != Cin:
        x = jnp.pad(x, ((0, 0), (0, Cin_p - Cin), (0, 0)))

    w1_f = _fuse_conv3x3_weights(w1, Cin_p, Cmid_p)             # (Cmid_p, 9*Cin_p)
    b1_f = jnp.pad(b1, (0, Cmid_p - Cmid)).reshape(Cmid_p, 1)
    w2_f = _fuse_conv3x3_weights(w2, Cmid_p, Cout)              # (Cout, 9*Cmid_p)
    b2_f = b2.reshape(Cout, 1)
    masks = _tap_masks(H, W)                                    # (9, HW)

    # NOTE: operands stay f32 for exact parity with the f32 reference; at real
    # UNet channel counts, cast weights/patches to bf16 (f32 accumulate) and add
    # an H row-band grid axis so per-step VMEM stays under v7x's 64 MiB.
    kernel = functools.partial(_double_conv_kernel, width=W)

    out_flat = pl.pallas_call(
        kernel,
        out_shape=jax.ShapeDtypeStruct((N, Cout, HW), x_nchw.dtype),
        grid_spec=pltpu.PrefetchScalarGridSpec(
            num_scalar_prefetch=0,
            grid=(N,),
            in_specs=[
                pl.BlockSpec((1, Cin_p, HW), lambda n: (n, 0, 0)),
                pl.BlockSpec((Cmid_p, 9 * Cin_p), lambda n: (0, 0)),
                pl.BlockSpec((Cmid_p, 1), lambda n: (0, 0)),
                pl.BlockSpec((Cout, 9 * Cmid_p), lambda n: (0, 0)),
                pl.BlockSpec((Cout, 1), lambda n: (0, 0)),
                pl.BlockSpec((9, HW), lambda n: (0, 0)),
            ],
            out_specs=pl.BlockSpec((1, Cout, HW), lambda n: (n, 0, 0)),
        ),
        compiler_params=pltpu.CompilerParams(
            dimension_semantics=("parallel",),
            vmem_limit_bytes=32 * 1024 * 1024,
        ),
    )(x, w1_f, b1_f, w2_f, b2_f, masks)

    return out_flat.reshape(N, Cout, H, W)


def _reference_double_conv(x, w1, b1, w2, b2):
    """Pure-JAX reference (lax conv, NCHW/OIHW) for correctness checking."""
    dn = ("NCHW", "OIHW", "NCHW")
    y = jax.lax.conv_general_dilated(x, w1, (1, 1), "SAME", dimension_numbers=dn)
    y = jax.nn.relu(y + b1[None, :, None, None])
    y = jax.lax.conv_general_dilated(y, w2, (1, 1), "SAME", dimension_numbers=dn)
    y = jax.nn.relu(y + b2[None, :, None, None])
    return y


if __name__ == "__main__":
    # DoubleConv(n_channels_in=4, n_channels_out=8) on a (2, 4, 16, 16) input.
    N, Cin, Cmid, H, W = 2, 4, 8, 16, 16
    Cout = Cmid

    key = jax.random.PRNGKey(0)
    kx, kw1, kb1, kw2, kb2 = jax.random.split(key, 5)

    x = jax.random.normal(kx, (N, Cin, H, W), dtype=jnp.float32)

    # PyTorch-style uniform init, OIHW weight layout (Cout, Cin, kH, kW).
    fan1 = Cin * 9
    fan2 = Cmid * 9
    lim1 = 1.0 / float(fan1) ** 0.5
    lim2 = 1.0 / float(fan2) ** 0.5
    w1 = jax.random.uniform(kw1, (Cmid, Cin, 3, 3), jnp.float32, -lim1, lim1)
    b1 = jax.random.uniform(kb1, (Cmid,), jnp.float32, -lim1, lim1)
    w2 = jax.random.uniform(kw2, (Cout, Cmid, 3, 3), jnp.float32, -lim2, lim2)
    b2 = jax.random.uniform(kb2, (Cout,), jnp.float32, -lim2, lim2)

    out = double_conv(x, w1, b1, w2, b2)
    out = jax.block_until_ready(out)

    ref = _reference_double_conv(x, w1, b1, w2, b2)
    assert out.shape == (N, Cout, H, W), out.shape
    max_err = float(jnp.max(jnp.abs(out - ref)))
    assert jnp.allclose(out, ref, atol=1e-4, rtol=1e-4), max_err

    print("KERNEL_OK")
</pallas_src>

<mosaic_0001>
module attributes {stable_mosaic.version = 11 : i64} {
  func.func @_double_conv_kernel(%arg0: i32, %arg1: memref<1x8x256xf32, #tpu.memory_space<vmem>>, %arg2: memref<8x72xf32, #tpu.memory_space<vmem>>, %arg3: memref<8x1xf32, #tpu.memory_space<vmem>>, %arg4: memref<8x72xf32, #tpu.memory_space<vmem>>, %arg5: memref<8x1xf32, #tpu.memory_space<vmem>>, %arg6: memref<9x256xf32, #tpu.memory_space<vmem>>, %arg7: memref<1x8x256xf32, #tpu.memory_space<vmem>>) attributes {dimension_semantics = [#tpu.dimension_semantics<parallel>], iteration_bounds = array<i64: 2>, scalar_prefetch = 0 : i64, scratch_operands = 0 : i64, tpu.core_type = #tpu.core_type<tc>, window_params = [{transform_indices = @transform_0, window_bounds = array<i64: 1, 8, 256>}, {pipeline_mode = #tpu.pipeline_mode<synchronous>, transform_indices = @transform_1, window_bounds = array<i64: 8, 72>}, {pipeline_mode = #tpu.pipeline_mode<synchronous>, transform_indices = @transform_2, window_bounds = array<i64: 8, 1>}, {pipeline_mode = #tpu.pipeline_mode<synchronous>, transform_indices = @transform_3, window_bounds = array<i64: 8, 72>}, {pipeline_mode = #tpu.pipeline_mode<synchronous>, transform_indices = @transform_4, window_bounds = array<i64: 8, 1>}, {pipeline_mode = #tpu.pipeline_mode<synchronous>, transform_indices = @transform_5, window_bounds = array<i64: 9, 256>}, {transform_indices = @transform_6, window_bounds = array<i64: 1, 8, 256>}]} {
    %c0 = arith.constant 0 : index
    %c0_0 = arith.constant 0 : index
    %c0_1 = arith.constant 0 : index
    %0 = vector.load %arg1[%c0, %c0_0, %c0_1] : memref<1x8x256xf32, #tpu.memory_space<vmem>>, vector<1x8x256xf32>
    %1 = vector.shape_cast %0 : vector<1x8x256xf32> to vector<8x256xf32>
    %c0_2 = arith.constant 0 : index
    %c0_3 = arith.constant 0 : index
    %2 = vector.load %arg6[%c0_2, %c0_3] : memref<9x256xf32, #tpu.memory_space<vmem>>, vector<9x256xf32>
    %c0_4 = arith.constant 0 : index
    %c0_5 = arith.constant 0 : index
    %3 = vector.load %arg2[%c0_4, %c0_5] : memref<8x72xf32, #tpu.memory_space<vmem>>, vector<8x72xf32>
    %c17_i32 = arith.constant 17 : i32
    %4 = tpu.dynamic_rotate %1 by %c17_i32 dim 1 : vector<8x256xf32>, i32 -> vector<8x256xf32>
    %5 = vector.extract_strided_slice %2 {offsets = [0, 0], sizes = [1, 256], strides = [1, 1]} : vector<9x256xf32> to vector<1x256xf32>
    %6 = vector.broadcast %5 : vector<1x256xf32> to vector<8x256xf32>
    %7 = arith.mulf %4, %6 : vector<8x256xf32>
    %c16_i32 = arith.constant 16 : i32
    %8 = tpu.dynamic_rotate %1 by %c16_i32 dim 1 : vector<8x256xf32>, i32 -> vector<8x256xf32>
    %9 = vector.extract_strided_slice %2 {offsets = [1, 0], sizes = [1, 256], strides = [1, 1]} : vector<9x256xf32> to vector<1x256xf32>
    %10 = vector.broadcast %9 : vector<1x256xf32> to vector<8x256xf32>
    %11 = arith.mulf %8, %10 : vector<8x256xf32>
    %c15_i32 = arith.constant 15 : i32
    %12 = tpu.dynamic_rotate %1 by %c15_i32 dim 1 : vector<8x256xf32>, i32 -> vector<8x256xf32>
    %13 = vector.extract_strided_slice %2 {offsets = [2, 0], sizes = [1, 256], strides = [1, 1]} : vector<9x256xf32> to vector<1x256xf32>
    %14 = vector.broadcast %13 : vector<1x256xf32> to vector<8x256xf32>
    %15 = arith.mulf %12, %14 : vector<8x256xf32>
    %c1_i32 = arith.constant 1 : i32
    %16 = tpu.dynamic_rotate %1 by %c1_i32 dim 1 : vector<8x256xf32>, i32 -> vector<8x256xf32>
    %17 = vector.extract_strided_slice %2 {offsets = [3, 0], sizes = [1, 256], strides = [1, 1]} : vector<9x256xf32> to vector<1x256xf32>
    %18 = vector.broadcast %17 : vector<1x256xf32> to vector<8x256xf32>
    %19 = arith.mulf %16, %18 : vector<8x256xf32>
    %c255_i32 = arith.constant 255 : i32
    %20 = tpu.dynamic_rotate %1 by %c255_i32 dim 1 : vector<8x256xf32>, i32 -> vector<8x256xf32>
    %21 = vector.extract_strided_slice %2 {offsets = [5, 0], sizes = [1, 256], strides = [1, 1]} : vector<9x256xf32> to vector<1x256xf32>
    %22 = vector.broadcast %21 : vector<1x256xf32> to vector<8x256xf32>
    %23 = arith.mulf %20, %22 : vector<8x256xf32>
    %c241_i32 = arith.constant 241 : i32
    %24 = tpu.dynamic_rotate %1 by %c241_i32 dim 1 : vector<8x256xf32>, i32 -> vector<8x256xf32>
    %25 = vector.extract_strided_slice %2 {offsets = [6, 0], sizes = [1, 256], strides = [1, 1]} : vector<9x256xf32> to vector<1x256xf32>
    %26 = vector.broadcast %25 : vector<1x256xf32> to vector<8x256xf32>
    %27 = arith.mulf %24, %26 : vector<8x256xf32>
    %c240_i32 = arith.constant 240 : i32
    %28 = tpu.dynamic_rotate %1 by %c240_i32 dim 1 : vector<8x256xf32>, i32 -> vector<8x256xf32>
    %29 = vector.extract_strided_slice %2 {offsets = [7, 0], sizes = [1, 256], strides = [1, 1]} : vector<9x256xf32> to vector<1x256xf32>
    %30 = vector.broadcast %29 : vector<1x256xf32> to vector<8x256xf32>
    %31 = arith.mulf %28, %30 : vector<8x256xf32>
    %c239_i32 = arith.constant 239 : i32
    %32 = tpu.dynamic_rotate %1 by %c239_i32 dim 1 : vector<8x256xf32>, i32 -> vector<8x256xf32>
    %33 = vector.extract_strided_slice %2 {offsets = [8, 0], sizes = [1, 256], strides = [1, 1]} : vector<9x256xf32> to vector<1x256xf32>
    %34 = vector.broadcast %33 : vector<1x256xf32> to vector<8x256xf32>
    %35 = arith.mulf %32, %34 : vector<8x256xf32>
    %36 = tpu.concatenate %7, %11, %15, %19, %1, %23, %27, %31, %35 in 0 : vector<8x256xf32>, vector<8x256xf32>, vector<8x256xf32>, vector<8x256xf32>, vector<8x256xf32>, vector<8x256xf32>, vector<8x256xf32>, vector<8x256xf32>, vector<8x256xf32> -> vector<72x256xf32>
    %cst = arith.constant dense<0.000000e+00> : vector<8x256xf32>
    %37 = tpu.matmul %3, %36, %cst {dimension_numbers = #tpu.dot_dimension_numbers<[1], [0], [0], [1], [0, 0, 1, 1], [], []>} : vector<8x72xf32>, vector<72x256xf32>, vector<8x256xf32> -> vector<8x256xf32>
    %c0_6 = arith.constant 0 : index
    %c0_7 = arith.constant 0 : index
    %38 = vector.load %arg3[%c0_6, %c0_7] : memref<8x1xf32, #tpu.memory_space<vmem>>, vector<8x1xf32>
    %39 = vector.broadcast %38 : vector<8x1xf32> to vector<8x256xf32>
    %40 = arith.addf %37, %39 : vector<8x256xf32>
    %cst_8 = arith.constant 0.000000e+00 : f32
    %41 = vector.broadcast %cst_8 : f32 to vector<8x256xf32>
    %42 = arith.maximumf %40, %41 : vector<8x256xf32>
    %c0_9 = arith.constant 0 : index
    %c0_10 = arith.constant 0 : index
    %43 = vector.load %arg4[%c0_9, %c0_10] : memref<8x72xf32, #tpu.memory_space<vmem>>, vector<8x72xf32>
    %c17_i32_11 = arith.constant 17 : i32
    %44 = tpu.dynamic_rotate %42 by %c17_i32_11 dim 1 : vector<8x256xf32>, i32 -> vector<8x256xf32>
    %45 = vector.extract_strided_slice %2 {offsets = [0, 0], sizes = [1, 256], strides = [1, 1]} : vector<9x256xf32> to vector<1x256xf32>
    %46 = vector.broadcast %45 : vector<1x256xf32> to vector<8x256xf32>
    %47 = arith.mulf %44, %46 : vector<8x256xf32>
    %c16_i32_12 = arith.constant 16 : i32
    %48 = tpu.dynamic_rotate %42 by %c16_i32_12 dim 1 : vector<8x256xf32>, i32 -> vector<8x256xf32>
    %49 = vector.extract_strided_slice %2 {offsets = [1, 0], sizes = [1, 256], strides = [1, 1]} : vector<9x256xf32> to vector<1x256xf32>
    %50 = vector.broadcast %49 : vector<1x256xf32> to vector<8x256xf32>
    %51 = arith.mulf %48, %50 : vector<8x256xf32>
    %c15_i32_13 = arith.constant 15 : i32
    %52 = tpu.dynamic_rotate %42 by %c15_i32_13 dim 1 : vector<8x256xf32>, i32 -> vector<8x256xf32>
    %53 = vector.extract_strided_slice %2 {offsets = [2, 0], sizes = [1, 256], strides = [1, 1]} : vector<9x256xf32> to vector<1x256xf32>
    %54 = vector.broadcast %53 : vector<1x256xf32> to vector<8x256xf32>
    %55 = arith.mulf %52, %54 : vector<8x256xf32>
    %c1_i32_14 = arith.constant 1 : i32
    %56 = tpu.dynamic_rotate %42 by %c1_i32_14 dim 1 : vector<8x256xf32>, i32 -> vector<8x256xf32>
    %57 = vector.extract_strided_slice %2 {offsets = [3, 0], sizes = [1, 256], strides = [1, 1]} : vector<9x256xf32> to vector<1x256xf32>
    %58 = vector.broadcast %57 : vector<1x256xf32> to vector<8x256xf32>
    %59 = arith.mulf %56, %58 : vector<8x256xf32>
    %c255_i32_15 = arith.constant 255 : i32
    %60 = tpu.dynamic_rotate %42 by %c255_i32_15 dim 1 : vector<8x256xf32>, i32 -> vector<8x256xf32>
    %61 = vector.extract_strided_slice %2 {offsets = [5, 0], sizes = [1, 256], strides = [1, 1]} : vector<9x256xf32> to vector<1x256xf32>
    %62 = vector.broadcast %61 : vector<1x256xf32> to vector<8x256xf32>
    %63 = arith.mulf %60, %62 : vector<8x256xf32>
    %c241_i32_16 = arith.constant 241 : i32
    %64 = tpu.dynamic_rotate %42 by %c241_i32_16 dim 1 : vector<8x256xf32>, i32 -> vector<8x256xf32>
    %65 = vector.extract_strided_slice %2 {offsets = [6, 0], sizes = [1, 256], strides = [1, 1]} : vector<9x256xf32> to vector<1x256xf32>
    %66 = vector.broadcast %65 : vector<1x256xf32> to vector<8x256xf32>
    %67 = arith.mulf %64, %66 : vector<8x256xf32>
    %c240_i32_17 = arith.constant 240 : i32
    %68 = tpu.dynamic_rotate %42 by %c240_i32_17 dim 1 : vector<8x256xf32>, i32 -> vector<8x256xf32>
    %69 = vector.extract_strided_slice %2 {offsets = [7, 0], sizes = [1, 256], strides = [1, 1]} : vector<9x256xf32> to vector<1x256xf32>
    %70 = vector.broadcast %69 : vector<1x256xf32> to vector<8x256xf32>
    %71 = arith.mulf %68, %70 : vector<8x256xf32>
    %c239_i32_18 = arith.constant 239 : i32
    %72 = tpu.dynamic_rotate %42 by %c239_i32_18 dim 1 : vector<8x256xf32>, i32 -> vector<8x256xf32>
    %73 = vector.extract_strided_slice %2 {offsets = [8, 0], sizes = [1, 256], strides = [1, 1]} : vector<9x256xf32> to vector<1x256xf32>
    %74 = vector.broadcast %73 : vector<1x256xf32> to vector<8x256xf32>
    %75 = arith.mulf %72, %74 : vector<8x256xf32>
    %76 = tpu.concatenate %47, %51, %55, %59, %42, %63, %67, %71, %75 in 0 : vector<8x256xf32>, vector<8x256xf32>, vector<8x256xf32>, vector<8x256xf32>, vector<8x256xf32>, vector<8x256xf32>, vector<8x256xf32>, vector<8x256xf32>, vector<8x256xf32> -> vector<72x256xf32>
    %cst_19 = arith.constant dense<0.000000e+00> : vector<8x256xf32>
    %77 = tpu.matmul %43, %76, %cst_19 {dimension_numbers = #tpu.dot_dimension_numbers<[1], [0], [0], [1], [0, 0, 1, 1], [], []>} : vector<8x72xf32>, vector<72x256xf32>, vector<8x256xf32> -> vector<8x256xf32>
    %c0_20 = arith.constant 0 : index
    %c0_21 = arith.constant 0 : index
    %78 = vector.load %arg5[%c0_20, %c0_21] : memref<8x1xf32, #tpu.memory_space<vmem>>, vector<8x1xf32>
    %79 = vector.broadcast %78 : vector<8x1xf32> to vector<8x256xf32>
    %80 = arith.addf %77, %79 : vector<8x256xf32>
    %cst_22 = arith.constant 0.000000e+00 : f32
    %81 = vector.broadcast %cst_22 : f32 to vector<8x256xf32>
    %82 = arith.maximumf %80, %81 : vector<8x256xf32>
    %c0_23 = arith.constant 0 : index
    %c0_24 = arith.constant 0 : index
    %c0_25 = arith.constant 0 : index
    %83 = vector.load %arg7[%c0_23, %c0_24, %c0_25] : memref<1x8x256xf32, #tpu.memory_space<vmem>>, vector<1x8x256xf32>
    %84 = vector.shape_cast %83 : vector<1x8x256xf32> to vector<8x256xf32>
    %85 = vector.shape_cast %82 : vector<8x256xf32> to vector<1x8x256xf32>
    tpu.vector_store %arg7[%c0_23, %c0_24, %c0_25], %85 {strides = array<i32>} : memref<1x8x256xf32, #tpu.memory_space<vmem>>, vector<1x8x256xf32>,
    return
  }
  func.func @transform_0(%arg0: i32) -> (i32, i32, i32) {
    %c0_i32 = arith.constant 0 : i32
    %c0_i32_0 = arith.constant 0 : i32
    %c0_i32_1 = arith.constant 0 : i32
    return %arg0, %c0_i32, %c0_i32_0 : i32, i32, i32
  }
  func.func @transform_1(%arg0: i32) -> (i32, i32) {
    %c0_i32 = arith.constant 0 : i32
    %c0_i32_0 = arith.constant 0 : i32
    %c0_i32_1 = arith.constant 0 : i32
    return %c0_i32, %c0_i32_0 : i32, i32
  }
  func.func @transform_2(%arg0: i32) -> (i32, i32) {
    %c0_i32 = arith.constant 0 : i32
    %c0_i32_0 = arith.constant 0 : i32
    %c0_i32_1 = arith.constant 0 : i32
    return %c0_i32, %c0_i32_0 : i32, i32
  }
  func.func @transform_3(%arg0: i32) -> (i32, i32) {
    %c0_i32 = arith.constant 0 : i32
    %c0_i32_0 = arith.constant 0 : i32
    %c0_i32_1 = arith.constant 0 : i32
    return %c0_i32, %c0_i32_0 : i32, i32
  }
  func.func @transform_4(%arg0: i32) -> (i32, i32) {
    %c0_i32 = arith.constant 0 : i32
    %c0_i32_0 = arith.constant 0 : i32
    %c0_i32_1 = arith.constant 0 : i32
    return %c0_i32, %c0_i32_0 : i32, i32
  }
  func.func @transform_5(%arg0: i32) -> (i32, i32) {
    %c0_i32 = arith.constant 0 : i32
    %c0_i32_0 = arith.constant 0 : i32
    %c0_i32_1 = arith.constant 0 : i32
    return %c0_i32, %c0_i32_0 : i32, i32
  }
  func.func @transform_6(%arg0: i32) -> (i32, i32, i32) {
    %c0_i32 = arith.constant 0 : i32
    %c0_i32_0 = arith.constant 0 : i32
    %c0_i32_1 = arith.constant 0 : i32
    return %arg0, %c0_i32, %c0_i32_0 : i32, i32, i32
  }
}

</mosaic_0001>

<llo_original>
// kernel: tpu_custom_call.1
$region0: #{tpu_custom_call.1}
  #allocation0 [shape = 'u32[]', space=smem, size = 0x4, offset = 0x4, fixed_abs, tag = 'smem constant byte address 0x4 - core index']
  #allocation1 [shape = 'u32[144,128]{1,0:T(1,128)}', space=vmem, size = 0x12000, scoped, tag = 'internal scratch']
  %s0 = inlined_call_operand.hbm [shape: f32[2,8,256], index: 0, kind: input, shape index: {}]
  %s1 = inlined_call_operand.hbm [shape: f32[8,72], index: 1, kind: input, shape index: {}]
  %s2 = inlined_call_operand.vmem [shape: f32[8,1], index: 2, kind: input, shape index: {}]
  %s3 = inlined_call_operand.hbm [shape: f32[8,72], index: 3, kind: input, shape index: {}]
  %s4 = inlined_call_operand.vmem [shape: f32[8,1], index: 4, kind: input, shape index: {}]
  %s5 = inlined_call_operand.vmem [shape: f32[9,256], index: 5, kind: input, shape index: {}]
  %s6 = inlined_call_operand.hbm [shape: f32[2,8,256], index: 6, kind: output, shape index: {}]
  %s7 = sld [smem:[#allocation0]]
  $region69: #{tpu_custom_call.1} parent=0
    _
  %s9 = ssub.s32 1, %s7
  %s10 = scalar_select 0, %s9, %s7
  $region1: #{tpu_custom_call.1} parent=0
    #allocation2 [shape = 'u8[16384]{0}', space=vmem, size = 0x4000, scoped, tag = 'input window, operand 0']
    #allocation3 [shape = 's32[2]{0}', space=sflag, size = 0x8, scoped, tag = 'scoped memory for tpu_custom_call.1']
    #allocation4 [shape = 's32[2]{0}', space=sflag, size = 0x8, scoped, tag = 'scoped memory for tpu_custom_call.1']
    #allocation5 [shape = 'u8[4096]{0}', space=vmem, size = 0x1000, scoped, tag = 'input window, operand 1, single buffered']
    #allocation6 [shape = 's32[1]{0}', space=sflag, size = 0x4, scoped, tag = 'scoped memory for tpu_custom_call.1']
    #allocation7 [shape = 'u8[4096]{0}', space=vmem, size = 0x1000, scoped, tag = 'input window, operand 3, single buffered']
    #allocation8 [shape = 'u8[16384]{0}', space=vmem, size = 0x4000, scoped, tag = 'output window, operand 0']
    %11 = vsyncpa [#allocation3], 0
    %s12 = scalar_lea.sflag [#allocation3], 1
    %13 = vsyncpa %s12, 0
    %14 = vsyncpa [#allocation6], 0
    %15 = vsyncpa [#allocation4], 0
    %s16 = scalar_lea.sflag [#allocation4], 1
    %17 = vsyncpa %s16, 0
    loop: start=0, step=1, limit=4
    $region2: #{tpu_custom_call.1} parent=1 // loop_pre_header
      _
    $region3: #{tpu_custom_call.1} parent=1 // loop_header
      %s19 = sphi 0, %s23
      %p20 = scmp.ge.s32.totalorder %s19, 4
      %s29 = sphi 0, %s31
      %s32 = sphi 0, %s29
      %s33 = sphi 0, %s32
      %s49 = sphi 0, %s33
      %s53 = sphi 0, %s53
      %s55 = sphi 0, %s53
      %s56 = sphi 0, %s55
      %s70 = sphi 0, %s56
      %s74 = sphi 0, %s74
      %s76 = sphi 0, %s74
      %s77 = sphi 0, %s76
      %s91 = sphi 0, %s77
      %s95 = sphi 0, %s95
      %s97 = sphi 0, %s95
      %s98 = sphi 0, %s97
      %s112 = sphi 0, %s98
      %s116 = sphi 0, %s116
      %s118 = sphi 0, %s116
      %s119 = sphi 0, %s118
      %s133 = sphi 0, %s119
      %s137 = sphi 0, %s137
      %s139 = sphi 0, %s137
      %s140 = sphi 0, %s139
      %s154 = sphi 0, %s140
      %s160 = sphi 0, %s162
      %s163 = sphi 0, %s160
      %s164 = sphi 0, %s163
      %s180 = sphi 0, %s164
    $region4: #{tpu_custom_call.1} parent=1 // loop_header_branch
      %22 = sbr.rel (%p20) target = $region8
    $region5: #{tpu_custom_call.1} parent=1 // loop_body
      %s24 = ssub.s32 %s19, 1
      %s25 = ssub.s32 %s19, 2
      %s26 = sadd.s32 %s19, 1
      %s27 = ssub.s32 %s19, %s26
      %p28 = scmp.eq.s32.totalorder %s27, 0
      %s30 = sadd.s32 %s29, 1
      %s31 = scalar_select %p28, %s29, %s30
      %p34 = pneg %p28
      %p35 = scmp.eq.s32.totalorder %s19, 1
      %p36 = por %p34, %p35
      %p37 = scmp.ne.s32.totalorder %s29, %s32
      %p38 = scmp.eq.s32.totalorder %s19, 0
      %p39 = por %p37, %p38
      %p40 = scmp.ne.s32.totalorder %s29, %s32
      %p41 = scmp.eq.s32.totalorder %s24, 1
      %p42 = por %p40, %p41
      %p43 = scmp.ne.s32.totalorder %s32, %s33
      %p44 = scmp.eq.s32.totalorder %s24, 0
      %p45 = por %p43, %p44
      %p46 = scmp.ne.s32.totalorder %s32, %s33
      %p47 = scmp.eq.s32.totalorder %s25, 1
      %p48 = por %p46, %p47
      %p50 = scmp.ne.s32.totalorder %s33, %s49
      %p51 = scmp.eq.s32.totalorder %s25, 0
      %p52 = por %p50, %p51
      %s54 = sadd.s32 %s53, 1
      %p57 = scmp.eq.s32.totalorder %s19, 1
      %p58 = scmp.ne.s32.totalorder %s53, %s55
      %p59 = scmp.eq.s32.totalorder %s19, 0
      %p60 = por %p58, %p59
      %p61 = scmp.ne.s32.totalorder %s53, %s55
      %p62 = scmp.eq.s32.totalorder %s24, 1
      %p63 = por %p61, %p62
      %p64 = scmp.ne.s32.totalorder %s55, %s56
      %p65 = scmp.eq.s32.totalorder %s24, 0
      %p66 = por %p64, %p65
      %p67 = scmp.ne.s32.totalorder %s55, %s56
      %p68 = scmp.eq.s32.totalorder %s25, 1
      %p69 = por %p67, %p68
      %p71 = scmp.ne.s32.totalorder %s56, %s70
      %p72 = scmp.eq.s32.totalorder %s25, 0
      %p73 = por %p71, %p72
      %s75 = sadd.s32 %s74, 1
      %p78 = scmp.eq.s32.totalorder %s19, 1
      %p79 = scmp.ne.s32.totalorder %s74, %s76
      %p80 = scmp.eq.s32.totalorder %s19, 0
      %p81 = por %p79, %p80
      %p82 = scmp.ne.s32.totalorder %s74, %s76
      %p83 = scmp.eq.s32.totalorder %s24, 1
      %p84 = por %p82, %p83
      %p85 = scmp.ne.s32.totalorder %s76, %s77
      %p86 = scmp.eq.s32.totalorder %s24, 0
      %p87 = por %p85, %p86
      %p88 = scmp.ne.s32.totalorder %s76, %s77
      %p89 = scmp.eq.s32.totalorder %s25, 1
      %p90 = por %p88, %p89
      %p92 = scmp.ne.s32.totalorder %s77, %s91
      %p93 = scmp.eq.s32.totalorder %s25, 0
      %p94 = por %p92, %p93
      %s96 = sadd.s32 %s95, 1
      %p99 = scmp.eq.s32.totalorder %s19, 1
      %p100 = scmp.ne.s32.totalorder %s95, %s97
      %p101 = scmp.eq.s32.totalorder %s19, 0
      %p102 = por %p100, %p101
      %p103 = scmp.ne.s32.totalorder %s95, %s97
      %p104 = scmp.eq.s32.totalorder %s24, 1
      %p105 = por %p103, %p104
      %p106 = scmp.ne.s32.totalorder %s97, %s98
      %p107 = scmp.eq.s32.totalorder %s24, 0
      %p108 = por %p106, %p107
      %p109 = scmp.ne.s32.totalorder %s97, %s98
      %p110 = scmp.eq.s32.totalorder %s25, 1
      %p111 = por %p109, %p110
      %p113 = scmp.ne.s32.totalorder %s98, %s112
      %p114 = scmp.eq.s32.totalorder %s25, 0
      %p115 = por %p113, %p114
      %s117 = sadd.s32 %s116, 1
      %p120 = scmp.eq.s32.totalorder %s19, 1
      %p121 = scmp.ne.s32.totalorder %s116, %s118
      %p122 = scmp.eq.s32.totalorder %s19, 0
      %p123 = por %p121, %p122
      %p124 = scmp.ne.s32.totalorder %s116, %s118
      %p125 = scmp.eq.s32.totalorder %s24, 1
      %p126 = por %p124, %p125
      %p127 = scmp.ne.s32.totalorder %s118, %s119
      %p128 = scmp.eq.s32.totalorder %s24, 0
      %p129 = por %p127, %p128
      %p130 = scmp.ne.s32.totalorder %s118, %s119
      %p131 = scmp.eq.s32.totalorder %s25, 1
      %p132 = por %p130, %p131
      %p134 = scmp.ne.s32.totalorder %s119, %s133
      %p135 = scmp.eq.s32.totalorder %s25, 0
      %p136 = por %p134, %p135
      %s138 = sadd.s32 %s137, 1
      %p141 = scmp.eq.s32.totalorder %s19, 1
      %p142 = scmp.ne.s32.totalorder %s137, %s139
      %p143 = scmp.eq.s32.totalorder %s19, 0
      %p144 = por %p142, %p143
      %p145 = scmp.ne.s32.totalorder %s137, %s139
      %p146 = scmp.eq.s32.totalorder %s24, 1
      %p147 = por %p145, %p146
      %p148 = scmp.ne.s32.totalorder %s139, %s140
      %p149 = scmp.eq.s32.totalorder %s24, 0
      %p150 = por %p148, %p149
      %p151 = scmp.ne.s32.totalorder %s139, %s140
      %p152 = scmp.eq.s32.totalorder %s25, 1
      %p153 = por %p151, %p152
      %p155 = scmp.ne.s32.totalorder %s140, %s154
      %p156 = scmp.eq.s32.totalorder %s25, 0
      %p157 = por %p155, %p156
      %s158 = ssub.s32 %s19, %s26
      %p159 = scmp.eq.s32.totalorder %s158, 0
      %s161 = sadd.s32 %s160, 1
      %s162 = scalar_select %p159, %s160, %s161
      %p165 = pneg %p159
      %p166 = scmp.eq.s32.totalorder %s19, 1
      %p167 = por %p165, %p166
      %p168 = scmp.ne.s32.totalorder %s160, %s163
      %p169 = scmp.eq.s32.totalorder %s19, 0
      %p170 = por %p168, %p169
      %p171 = scmp.ne.s32.totalorder %s160, %s163
      %p172 = scmp.eq.s32.totalorder %s24, 1
      %p173 = por %p171, %p172
      %p174 = scmp.ne.s32.totalorder %s163, %s164
      %p175 = scmp.eq.s32.totalorder %s24, 0
      %p176 = por %p174, %p175
      %p177 = scmp.ne.s32.totalorder %s163, %s164
      %p178 = scmp.eq.s32.totalorder %s25, 1
      %p179 = por %p177, %p178
      %p181 = scmp.ne.s32.totalorder %s164, %s180
      %p182 = scmp.eq.s32.totalorder %s25, 0
      %p183 = por %p181, %p182
      %p184 = scmp.le.s32.totalorder 1, %s19
      %p185 = scmp.lt.s32.totalorder %s19, 3
      %p186 = pnand %p184, %p185
      %p187 = pneg %p186
      // Predicated region
      $region9: #{tpu_custom_call.1} parent=5 // pred_check
        _
      $region10: #{tpu_custom_call.1} parent=5 // pred_check_branch
        %189 = sbr.rel (%p186) target = $region12
      $region11: #{tpu_custom_call.1} parent=5 // pred_region
        %s190 = ssub.s32 %s19, 1
        // Predicated region
        $region13: #{tpu_custom_call.1} parent=11 // pred_check
          %p191 = pneg %p66
        $region14: #{tpu_custom_call.1} parent=11 // pred_check_branch
          %193 = sbr.rel (%p191) target = $region16
        $region15: #{tpu_custom_call.1} parent=11 // pred_region
          %s195 = ssub.s32 128, 128
          %196 = vsyncadd [#allocation6], %s195
          %s198 = sshll.u32 [#allocation5], 4
          %s199 = int_to_ptr.vmem [resolvable:$true] %s198
          %201 = dma.hbm_to_vmem [thread:$0]  %s1, 128, %s199, [#allocation6]
        $region16: #{tpu_custom_call.1} parent=11 // pred_fallthru
          _
        // Predicated region
        $region17: #{tpu_custom_call.1} parent=11 // pred_check
          %p202 = pneg %p87
        $region18: #{tpu_custom_call.1} parent=11 // pred_check_branch
          %204 = sbr.rel (%p202) target = $region20
        $region19: #{tpu_custom_call.1} parent=11 // pred_region
          _
        $region20: #{tpu_custom_call.1} parent=11 // pred_fallthru
          _
        // Predicated region
        $region21: #{tpu_custom_call.1} parent=11 // pred_check
          %p205 = pneg %p108
        $region22: #{tpu_custom_call.1} parent=11 // pred_check_branch
          %207 = sbr.rel (%p205) target = $region24
        $region23: #{tpu_custom_call.1} parent=11 // pred_region
          %s209 = ssub.s32 128, 128
          %210 = vsyncadd [#allocation6], %s209
          %s212 = sshll.u32 [#allocation7], 4
          %s213 = int_to_ptr.vmem [resolvable:$true] %s212
          %215 = dma.hbm_to_vmem [thread:$0]  %s3, 128, %s213, [#allocation6]
        $region24: #{tpu_custom_call.1} parent=11 // pred_fallthru
          _
        // Predicated region
        $region25: #{tpu_custom_call.1} parent=11 // pred_check
          %p216 = pneg %p129
        $region26: #{tpu_custom_call.1} parent=11 // pred_check_branch
          %218 = sbr.rel (%p216) target = $region28
        $region27: #{tpu_custom_call.1} parent=11 // pred_region
          _
        $region28: #{tpu_custom_call.1} parent=11 // pred_fallthru
          _
        // Predicated region
        $region29: #{tpu_custom_call.1} parent=11 // pred_check
          %p219 = pneg %p150
        $region30: #{tpu_custom_call.1} parent=11 // pred_check_branch
          %221 = sbr.rel (%p219) target = $region32
        $region31: #{tpu_custom_call.1} parent=11 // pred_region
          _
        $region32: #{tpu_custom_call.1} parent=11 // pred_fallthru
          _
      $region12: #{tpu_custom_call.1} parent=5 // pred_fallthru
        _
      %p222 = scmp.lt.s32.totalorder %s19, 2
      // Predicated region
      $region33: #{tpu_custom_call.1} parent=5 // pred_check
        %p223 = pneg %p222
      $region34: #{tpu_custom_call.1} parent=5 // pred_check_branch
        %225 = sbr.rel (%p223) target = $region36
      $region35: #{tpu_custom_call.1} parent=5 // pred_region
        // Predicated region
        $region37: #{tpu_custom_call.1} parent=35 // pred_check
          %p226 = pneg %p39
        $region38: #{tpu_custom_call.1} parent=35 // pred_check_branch
          %228 = sbr.rel (%p226) target = $region40
        $region39: #{tpu_custom_call.1} parent=35 // pred_region
          %s229 = sand.u32 %s29, 1
          %s230 = scalar_lea.sflag [#allocation3], %s229
          %s231 = sand.u32 %s29, 1
          %s232 = smul.addr %s231, 16
          %s233 = scalar_lea.vmem [#allocation2], %s232
          %s235 = ssub.s32 256, 256
          %236 = vsyncadd %s230, %s235
          %s237 = smul.addr %s19, 2
          %s238 = smul.addr %s237, 128
          %s239 = scalar_lea.hbm %s0, %s238
          %s241 = sshll.u32 %s233, 4
          %s242 = int_to_ptr.vmem [resolvable:$true] %s241
          %244 = dma.hbm_to_vmem [thread:$0]  %s239, 256, %s242, %s230
        $region40: #{tpu_custom_call.1} parent=35 // pred_fallthru
          _
      $region36: #{tpu_custom_call.1} parent=5 // pred_fallthru
        _
      %p245 = scmp.le.s32.totalorder 1, %s19
      %p246 = scmp.lt.s32.totalorder %s19, 3
      %p247 = pnand %p245, %p246
      %p248 = pneg %p247
      // Predicated region
      $region41: #{tpu_custom_call.1} parent=5 // pred_check
        _
      $region42: #{tpu_custom_call.1} parent=5 // pred_check_branch
        %250 = sbr.rel (%p247) target = $region44
      $region43: #{tpu_custom_call.1} parent=5 // pred_region
        %s251 = ssub.s32 %s19, 1
        %s252 = sand.u32 %s32, 1
        %s253 = scalar_lea.sflag [#allocation3], %s252
        %s254 = sand.u32 %s32, 1
        %s255 = smul.addr %s254, 16
        %s256 = scalar_lea.vmem [#allocation2], %s255
        // Predicated region
        $region45: #{tpu_custom_call.1} parent=43 // pred_check
          %p257 = pneg %p45
        $region46: #{tpu_custom_call.1} parent=43 // pred_check_branch
          %259 = sbr.rel (%p257) target = $region48
        $region47: #{tpu_custom_call.1} parent=43 // pred_region
          %260 = dma.done %s253, 256
        $region48: #{tpu_custom_call.1} parent=43 // pred_fallthru
          _
        // Predicated region
        $region49: #{tpu_custom_call.1} parent=43 // pred_check
          %p261 = pneg %p66
        $region50: #{tpu_custom_call.1} parent=43 // pred_check_branch
          %263 = sbr.rel (%p261) target = $region52
        $region51: #{tpu_custom_call.1} parent=43 // pred_region
          %264 = dma.done [#allocation6], 128
        $region52: #{tpu_custom_call.1} parent=43 // pred_fallthru
          _
        // Predicated region
        $region53: #{tpu_custom_call.1} parent=43 // pred_check
          %p265 = pneg %p108
        $region54: #{tpu_custom_call.1} parent=43 // pred_check_branch
          %267 = sbr.rel (%p265) target = $region56
        $region55: #{tpu_custom_call.1} parent=43 // pred_region
          %268 = dma.done [#allocation6], 128
        $region56: #{tpu_custom_call.1} parent=43 // pred_fallthru
          _
        %s269 = sand.u32 %s32, 1
        %s270 = scalar_lea.sflag [#allocation3], %s269
        %s271 = sand.u32 %s32, 1
        %s272 = smul.addr %s271, 16
        %s273 = scalar_lea.vmem [#allocation2], %s272
        %p274 = pneg %p45
        %p275 = pneg %p42
        %p276 = pneg %p66
        %p277 = pneg %p63
        %p278 = pneg %p87
        %p279 = pneg %p84
        %p280 = pneg %p108
        %p281 = pneg %p105
        %p282 = pneg %p129
        %p283 = pneg %p126
        %p284 = pneg %p150
        %p285 = pneg %p147
        %p286 = pneg %p176
        %p287 = pneg %p173
        %s288 = sand.u32 %s163, 1
        %s289 = scalar_lea.sflag [#allocation4], %s288
        %s290 = sand.u32 %s163, 1
        %s291 = smul.addr %s290, 16
        %s292 = scalar_lea.vmem [#allocation8], %s291
        %v293 = vld [vmem:[%s256] sm:$0xff]
        %v294 = vld [vmem:[%s256 + $0x8] sm:$0xff]
        %v295 = vld [vmem:[%s5] sm:$0xff]
        %v296 = vld [vmem:[%s5 + $0x8] sm:$0xff]
        %v297 = vld [vmem:[%s5 + $0x10] sm:$0x1]
        %v298 = vld [vmem:[%s5 + $0x18] sm:$0x1]
        %v299 = vld [vmem:[#allocation5] sm:$0xff]
        %300 = vrot.lane.b32.xlu0 %v293, 17
        %v301 = vpop.permute.xlu0 %300
        %302 = vrot.lane.b32.xlu0 %v294, 17
        %v303 = vpop.permute.xlu0 %302
        %v304 = vlaneseq
        %v305 = vand.u32 %v304, 127
        %vm306 = vcmp.lt.s32.totalorder %v305, 17
        %v307 = vsel %vm306, %v301, %v303
        %v308 = vsel %vm306, %v303, %v301
        %v309 = vlaneseq
        %v310 = vshrl.u32 %v309, 7
        %v311 = vsub.s32 0, %v310
        %v312 = vrot.slane %v295, %v311
        %v313 = vlaneseq
        %v314 = vshrl.u32 %v313, 7
        %v315 = vsub.s32 0, %v314
        %v316 = vrot.slane %v296, %v315
        %v317 = vmul.f32 %v308, %v312
        %v318 = vmul.f32 %v307, %v316
        %319 = vrot.lane.b32.xlu0 %v293, 16
        %v320 = vpop.permute.xlu0 %319
        %321 = vrot.lane.b32.xlu0 %v294, 16
        %v322 = vpop.permute.xlu0 %321
        %vm323 = vcmp.lt.s32.totalorder %v305, 16
        %v324 = vsel %vm323, %v320, %v322
        %v325 = vsel %vm323, %v322, %v320
        %v326 = vlaneseq
        %v327 = vshrl.u32 %v326, 7
        %v328 = vsub.s32 1, %v327
        %v329 = vrot.slane %v295, %v328
        %v330 = vlaneseq
        %v331 = vshrl.u32 %v330, 7
        %v332 = vsub.s32 1, %v331
        %v333 = vrot.slane %v296, %v332
        %v334 = vmul.f32 %v325, %v329
        %v335 = vmul.f32 %v324, %v333
        %336 = vrot.lane.b32.xlu0 %v293, 15
        %v337 = vpop.permute.xlu0 %336
        %338 = vrot.lane.b32.xlu0 %v294, 15
        %v339 = vpop.permute.xlu0 %338
        %vm340 = vcmp.lt.s32.totalorder %v305, 15
        %v341 = vsel %vm340, %v337, %v339
        %v342 = vsel %vm340, %v339, %v337
        %v343 = vlaneseq
        %v344 = vshrl.u32 %v343, 7
        %v345 = vsub.s32 2, %v344
        %v346 = vrot.slane %v295, %v345
        %v347 = vlaneseq
        %v348 = vshrl.u32 %v347, 7
        %v349 = vsub.s32 2, %v348
        %v350 = vrot.slane %v296, %v349
        %v351 = vmul.f32 %v342, %v346
        %v352 = vmul.f32 %v341, %v350
        %353 = vrot.lane.b32.xlu0 %v293, 1
        %v354 = vpop.permute.xlu0 %353
        %355 = vrot.lane.b32.xlu0 %v294, 1
        %v356 = vpop.permute.xlu0 %355
        %vm357 = vcmp.lt.s32.totalorder %v305, 1
        %v358 = vsel %vm357, %v354, %v356
        %v359 = vsel %vm357, %v356, %v354
        %v360 = vlaneseq
        %v361 = vshrl.u32 %v360, 7
        %v362 = vsub.s32 3, %v361
        %v363 = vrot.slane %v295, %v362
        %v364 = vlaneseq
        %v365 = vshrl.u32 %v364, 7
        %v366 = vsub.s32 3, %v365
        %v367 = vrot.slane %v296, %v366
        %v368 = vmul.f32 %v359, %v363
        %v369 = vmul.f32 %v358, %v367
        %370 = vrot.lane.b32.xlu0 %v293, 127
        %v371 = vpop.permute.xlu0 %370
        %372 = vrot.lane.b32.xlu0 %v294, 127
        %v373 = vpop.permute.xlu0 %372
        %vm374 = vcmp.lt.s32.totalorder %v305, 127
        %v375 = vsel %vm374, %v371, %v373
        %v376 = vsel %vm374, %v373, %v371
        %v377 = vlaneseq
        %v378 = vshrl.u32 %v377, 7
        %v379 = vsub.s32 5, %v378
        %v380 = vrot.slane %v295, %v379
        %v381 = vlaneseq
        %v382 = vshrl.u32 %v381, 7
        %v383 = vsub.s32 5, %v382
        %v384 = vrot.slane %v296, %v383
        %v385 = vmul.f32 %v375, %v380
        %v386 = vmul.f32 %v376, %v384
        %387 = vrot.lane.b32.xlu0 %v293, 113
        %v388 = vpop.permute.xlu0 %387
        %389 = vrot.lane.b32.xlu0 %v294, 113
        %v390 = vpop.permute.xlu0 %389
        %vm391 = vcmp.lt.s32.totalorder %v305, 113
        %v392 = vsel %vm391, %v388, %v390
        %v393 = vsel %vm391, %v390, %v388
        %v394 = vlaneseq
        %v395 = vshrl.u32 %v394, 7
        %v396 = vsub.s32 6, %v395
        %v397 = vrot.slane %v295, %v396
        %v398 = vlaneseq
        %v399 = vshrl.u32 %v398, 7
        %v400 = vsub.s32 6, %v399
        %v401 = vrot.slane %v296, %v400
        %v402 = vmul.f32 %v392, %v397
        %v403 = vmul.f32 %v393, %v401
        %404 = vrot.lane.b32.xlu0 %v293, 112
        %v405 = vpop.permute.xlu0 %404
        %406 = vrot.lane.b32.xlu0 %v294, 112
        %v407 = vpop.permute.xlu0 %406
        %vm408 = vcmp.lt.s32.totalorder %v305, 112
        %v409 = vsel %vm408, %v405, %v407
        %v410 = vsel %vm408, %v407, %v405
        %v411 = vlaneseq
        %v412 = vshrl.u32 %v411, 7
        %v413 = vsub.s32 7, %v412
        %v414 = vrot.slane %v295, %v413
        %v415 = vlaneseq
        %v416 = vshrl.u32 %v415, 7
        %v417 = vsub.s32 7, %v416
        %v418 = vrot.slane %v296, %v417
        %v419 = vmul.f32 %v409, %v414
        %v420 = vmul.f32 %v410, %v418
        %421 = vrot.lane.b32.xlu0 %v293, 111
        %v422 = vpop.permute.xlu0 %421
        %423 = vrot.lane.b32.xlu0 %v294, 111
        %v424 = vpop.permute.xlu0 %423
        %vm425 = vcmp.lt.s32.totalorder %v305, 111
        %v426 = vsel %vm425, %v422, %v424
        %v427 = vsel %vm425, %v424, %v422
        %v428 = vlaneseq
        %v429 = vshrl.u32 %v428, 7
        %v430 = vsub.s32 0, %v429
        %v431 = vrot.slane %v297, %v430
        %v432 = vlaneseq
        %v433 = vshrl.u32 %v432, 7
        %v434 = vsub.s32 0, %v433
        %v435 = vrot.slane %v298, %v434
        %v436 = vmul.f32 %v426, %v431
        %v437 = vmul.f32 %v427, %v435
        %v438 = vld [vmem:[%s2] sm:$0xff]
        %440 = vset.pattern.permute.xlu0 0
        %441 = vperm.xlu0 %440, %v438
        %v442 = vpop.permute.xlu0 %441
        %vm444 = vcmask 588800
        %v446 = vsel %vm444, %v299, 0
        %448 = vmatprep.subr.mxu0 %v318
        %449 = vmatpush1.msra.mxu0 %v317
        %450 = vmatprep.subr.mxu0 %v335
        %451 = vmatpush1.msra.mxu0 %v334
        %452 = vmatprep.subr.mxu0 %v352
        %453 = vmatpush1.msra.mxu0 %v351
        %454 = vmatprep.subr.mxu0 %v369
        %455 = vmatpush1.msra.mxu0 %v368
        %456 = vmatprep.subr.mxu0 %v294
        %457 = vmatpush1.msra.mxu0 %v293
        %458 = vmatprep.subr.mxu0 %v386
        %459 = vmatpush1.msra.mxu0 %v385
        %460 = vmatprep.subr.mxu0 %v403
        %461 = vmatpush1.msra.mxu0 %v402
        %462 = vmatprep.subr.mxu0 %v420
        %463 = vmatpush1.msra.mxu0 %v419
        %464 = vmatprep.subr.mxu0 %v437
        %465 = vmatpush1.msra.mxu0 %v436
        %466 = vmatprep.subr.mxu0 0.0
        %467 = vmatpush1.msra.mxu0 0.0
        %468 = vmatprep.subr.mxu0 0.0
        %469 = vmatpush1.msra.mxu0 0.0
        %470 = vmatprep.subr.mxu0 0.0
        %471 = vmatpush1.msra.mxu0 0.0
        %472 = vmatprep.subr.mxu0 0.0
        %473 = vmatpush1.msra.mxu0 0.0
        %474 = vmatprep.subr.mxu0 0.0
        %475 = vmatpush1.msra.mxu0 0.0
        %476 = vmatprep.subr.mxu0 0.0
        %477 = vmatpush1.msra.mxu0 0.0
        %478 = vmatprep.subr.mxu0 0.0
        %479 = vmatpush1.msra.mxu0 0.0
        %480 = vmatprep.subr.mxu0 0.0
        %481 = vmatpush1.msra.mxu0 0.0
        %482 = vmatprep.subr.mxu0 0.0
        %483 = vmatpush1.msra.mxu0 0.0
        %484 = vmatprep.subr.mxu0 0.0
        %485 = vmatpush1.msra.mxu0 0.0
        %486 = vmatprep.subr.mxu0 0.0
        %487 = vmatpush1.msra.mxu0 0.0
        %488 = vmatprep.subr.mxu0 0.0
        %489 = vmatpush1.msra.mxu0 0.0
        %490 = vmatprep.subr.mxu0 0.0
        %491 = vmatpush1.msra.mxu0 0.0
        %492 = vmatprep.subr.mxu0 0.0
        %493 = vmatpush1.msra.mxu0 0.0
        %494 = vmatprep.subr.mxu0 0.0
        %495 = vmatpush1.msra.mxu0 0.0
        %496 = vmatprep.subr.mxu0 0.0
        %497 = vmatpush1.msra.mxu0 0.0
        %498 = vmatprep.subr.mxu0 0.0
        %499 = vmatpush1.msra.mxu0 0.0
        %500 = vmatprep.subr.mxu0 0.0
        %501 = vmatpush1.msra.mxu0 0.0
        %502 = vmatprep.subr.mxu0 0.0
        %503 = vmatpush1.msra.mxu0 0.0
        %504 = vmatprep.subr.mxu0 0.0
        %505 = vmatpush1.msra.mxu0 0.0
        %506 = vmatprep.subr.mxu0 0.0
        %507 = vmatpush1.msra.mxu0 0.0
        %508 = vmatprep.subr.mxu0 0.0
        %509 = vmatpush1.msra.mxu0 0.0
        %510 = vmatprep.subr.mxu0 0.0
        %511 = vmatpush1.msra.mxu0 0.0
        %512 = vmatprep.mubr.f32.mxu0 0.0
        %513 = vmatmul.mubr.f32.gmra.mrb[0].mxu0 %v446
        %v514 = vpop.f32.mrb[0].mxu0
        %v515 = vadd.f32 %v442, %v514
        %v516 = vpop.f32.mrb[0].mxu0
        %v517 = vadd.f32 %v442, %v516
        %518 = vdwg.mxu0
        %v519 = vmax.f32 %v515, 0.0
        %v520 = vmax.f32 %v517, 0.0
        %v521 = vld [vmem:[#allocation7] sm:$0xff]
        %522 = vrot.lane.b32.xlu0 %v519, 17
        %v523 = vpop.permute.xlu0 %522
        %524 = vrot.lane.b32.xlu0 %v520, 17
        %v525 = vpop.permute.xlu0 %524
        %v526 = vsel %vm306, %v523, %v525
        %v527 = vsel %vm306, %v525, %v523
        %v528 = vmul.f32 %v527, %v312
        %v529 = vmul.f32 %v526, %v316
        %530 = vrot.lane.b32.xlu0 %v519, 16
        %v531 = vpop.permute.xlu0 %530
        %532 = vrot.lane.b32.xlu0 %v520, 16
        %v533 = vpop.permute.xlu0 %532
        %v534 = vsel %vm323, %v531, %v533
        %v535 = vsel %vm323, %v533, %v531
        %v536 = vmul.f32 %v535, %v329
        %v537 = vmul.f32 %v534, %v333
        %538 = vrot.lane.b32.xlu0 %v519, 15
        %v539 = vpop.permute.xlu0 %538
        %540 = vrot.lane.b32.xlu0 %v520, 15
        %v541 = vpop.permute.xlu0 %540
        %v542 = vsel %vm340, %v539, %v541
        %v543 = vsel %vm340, %v541, %v539
        %v544 = vmul.f32 %v543, %v346
        %v545 = vmul.f32 %v542, %v350
        %546 = vrot.lane.b32.xlu0 %v519, 1
        %v547 = vpop.permute.xlu0 %546
        %548 = vrot.lane.b32.xlu0 %v520, 1
        %v549 = vpop.permute.xlu0 %548
        %v550 = vsel %vm357, %v547, %v549
        %v551 = vsel %vm357, %v549, %v547
        %v552 = vmul.f32 %v551, %v363
        %v553 = vmul.f32 %v550, %v367
        %554 = vrot.lane.b32.xlu0 %v519, 127
        %v555 = vpop.permute.xlu0 %554
        %556 = vrot.lane.b32.xlu0 %v520, 127
        %v557 = vpop.permute.xlu0 %556
        %v558 = vsel %vm374, %v555, %v557
        %v559 = vsel %vm374, %v557, %v555
        %v560 = vmul.f32 %v558, %v380
        %v561 = vmul.f32 %v559, %v384
        %562 = vrot.lane.b32.xlu0 %v519, 113
        %v563 = vpop.permute.xlu0 %562
        %564 = vrot.lane.b32.xlu0 %v520, 113
        %v565 = vpop.permute.xlu0 %564
        %v566 = vsel %vm391, %v563, %v565
        %v567 = vsel %vm391, %v565, %v563
        %v568 = vmul.f32 %v566, %v397
        %v569 = vmul.f32 %v567, %v401
        %570 = vrot.lane.b32.xlu0 %v519, 112
        %v571 = vpop.permute.xlu0 %570
        %572 = vrot.lane.b32.xlu0 %v520, 112
        %v573 = vpop.permute.xlu0 %572
        %v574 = vsel %vm408, %v571, %v573
        %v575 = vsel %vm408, %v573, %v571
        %v576 = vmul.f32 %v574, %v414
        %v577 = vmul.f32 %v575, %v418
        %578 = vrot.lane.b32.xlu0 %v519, 111
        %v579 = vpop.permute.xlu0 %578
        %580 = vrot.lane.b32.xlu0 %v520, 111
        %v581 = vpop.permute.xlu0 %580
        %v582 = vsel %vm425, %v579, %v581
        %v583 = vsel %vm425, %v581, %v579
        %v584 = vmul.f32 %v582, %v431
        %v585 = vmul.f32 %v583, %v435
        %v586 = vld [vmem:[%s4] sm:$0xff]
        %588 = vset.pattern.permute.xlu0 0
        %589 = vperm.xlu0 %588, %v586
        %v590 = vpop.permute.xlu0 %589
        %v593 = vsel %vm444, %v521, 0
        %595 = vmatprep.subr.mxu0 %v529
        %596 = vmatpush1.msra.mxu0 %v528
        %597 = vmatprep.subr.mxu0 %v537
        %598 = vmatpush1.msra.mxu0 %v536
        %599 = vmatprep.subr.mxu0 %v545
        %600 = vmatpush1.msra.mxu0 %v544
        %601 = vmatprep.subr.mxu0 %v553
        %602 = vmatpush1.msra.mxu0 %v552
        %603 = vmatprep.subr.mxu0 %v520
        %604 = vmatpush1.msra.mxu0 %v519
        %605 = vmatprep.subr.mxu0 %v561
        %606 = vmatpush1.msra.mxu0 %v560
        %607 = vmatprep.subr.mxu0 %v569
        %608 = vmatpush1.msra.mxu0 %v568
        %609 = vmatprep.subr.mxu0 %v577
        %610 = vmatpush1.msra.mxu0 %v576
        %611 = vmatprep.subr.mxu0 %v585
        %612 = vmatpush1.msra.mxu0 %v584
        %613 = vmatprep.subr.mxu0 0.0
        %614 = vmatpush1.msra.mxu0 0.0
        %615 = vmatprep.subr.mxu0 0.0
        %616 = vmatpush1.msra.mxu0 0.0
        %617 = vmatprep.subr.mxu0 0.0
        %618 = vmatpush1.msra.mxu0 0.0
        %619 = vmatprep.subr.mxu0 0.0
        %620 = vmatpush1.msra.mxu0 0.0
        %621 = vmatprep.subr.mxu0 0.0
        %622 = vmatpush1.msra.mxu0 0.0
        %623 = vmatprep.subr.mxu0 0.0
        %624 = vmatpush1.msra.mxu0 0.0
        %625 = vmatprep.subr.mxu0 0.0
        %626 = vmatpush1.msra.mxu0 0.0
        %627 = vmatprep.subr.mxu0 0.0
        %628 = vmatpush1.msra.mxu0 0.0
        %629 = vmatprep.subr.mxu0 0.0
        %630 = vmatpush1.msra.mxu0 0.0
        %631 = vmatprep.subr.mxu0 0.0
        %632 = vmatpush1.msra.mxu0 0.0
        %633 = vmatprep.subr.mxu0 0.0
        %634 = vmatpush1.msra.mxu0 0.0
        %635 = vmatprep.subr.mxu0 0.0
        %636 = vmatpush1.msra.mxu0 0.0
        %637 = vmatprep.subr.mxu0 0.0
        %638 = vmatpush1.msra.mxu0 0.0
        %639 = vmatprep.subr.mxu0 0.0
        %640 = vmatpush1.msra.mxu0 0.0
        %641 = vmatprep.subr.mxu0 0.0
        %642 = vmatpush1.msra.mxu0 0.0
        %643 = vmatprep.subr.mxu0 0.0
        %644 = vmatpush1.msra.mxu0 0.0
        %645 = vmatprep.subr.mxu0 0.0
        %646 = vmatpush1.msra.mxu0 0.0
        %647 = vmatprep.subr.mxu0 0.0
        %648 = vmatpush1.msra.mxu0 0.0
        %649 = vmatprep.subr.mxu0 0.0
        %650 = vmatpush1.msra.mxu0 0.0
        %651 = vmatprep.subr.mxu0 0.0
        %652 = vmatpush1.msra.mxu0 0.0
        %653 = vmatprep.subr.mxu0 0.0
        %654 = vmatpush1.msra.mxu0 0.0
        %655 = vmatprep.subr.mxu0 0.0
        %656 = vmatpush1.msra.mxu0 0.0
        %657 = vmatprep.subr.mxu0 0.0
        %658 = vmatpush1.msra.mxu0 0.0
        %659 = vmatprep.mubr.f32.mxu0 0.0
        %660 = vmatmul.mubr.f32.gmra.mrb[0].mxu0 %v593
        %v661 = vpop.f32.mrb[0].mxu0
        %v662 = vadd.f32 %v590, %v661
        %v663 = vpop.f32.mrb[0].mxu0
        %v664 = vadd.f32 %v590, %v663
        %665 = vdwg.mxu0
        %v666 = vmax.f32 %v662, 0.0
        %v667 = vmax.f32 %v664, 0.0
        %668 = vst [vmem:[%s292] sm:$0xff] %v666
        %669 = vst [vmem:[%s292 + $0x8] sm:$0xff] %v667
        %s670 = sand.u32 %s163, 1
        %s671 = scalar_lea.sflag [#allocation4], %s670
        %s672 = sand.u32 %s163, 1
        %s673 = smul.addr %s672, 16
        %s674 = scalar_lea.vmem [#allocation8], %s673
        // Predicated region
        $region57: #{tpu_custom_call.1} parent=43 // pred_check
          %p675 = pneg %p173
        $region58: #{tpu_custom_call.1} parent=43 // pred_check_branch
          %677 = sbr.rel (%p675) target = $region60
        $region59: #{tpu_custom_call.1} parent=43 // pred_region
          %s679 = ssub.s32 256, 256
          %680 = vsyncadd %s671, %s679
          %s681 = smul.addr %s24, 2
          %s682 = smul.addr %s681, 128
          %s683 = scalar_lea.hbm %s6, %s682
          %s685 = sshll.u32 %s674, 4
          %s686 = int_to_ptr.vmem [resolvable:$true] %s685
          %688 = dma.vmem_to_hbm [thread:$0]  %s686, 256, %s683, %s671
        $region60: #{tpu_custom_call.1} parent=43 // pred_fallthru
          _
      $region44: #{tpu_custom_call.1} parent=5 // pred_fallthru
        _
      %p689 = scmp.le.s32.totalorder 2, %s19
      // Predicated region
      $region61: #{tpu_custom_call.1} parent=5 // pred_check
        %p690 = pneg %p689
      $region62: #{tpu_custom_call.1} parent=5 // pred_check_branch
        %692 = sbr.rel (%p690) target = $region64
      $region63: #{tpu_custom_call.1} parent=5 // pred_region
        %s693 = ssub.s32 %s19, 2
        // Predicated region
        $region65: #{tpu_custom_call.1} parent=63 // pred_check
          %p694 = pneg %p179
        $region66: #{tpu_custom_call.1} parent=63 // pred_check_branch
          %696 = sbr.rel (%p694) target = $region68
        $region67: #{tpu_custom_call.1} parent=63 // pred_region
          %s697 = sand.u32 %s164, 1
          %s698 = scalar_lea.sflag [#allocation4], %s697
          %s699 = sand.u32 %s164, 1
          %s700 = smul.addr %s699, 16
          %s701 = scalar_lea.vmem [#allocation8], %s700
          %702 = dma.done %s698, 256
        $region68: #{tpu_custom_call.1} parent=63 // pred_fallthru
          _
      $region64: #{tpu_custom_call.1} parent=5 // pred_fallthru
        _
    $region6: #{tpu_custom_call.1} parent=1 // loop_footer
      %s23 = sadd.s32 1, %s19
    $region7: #{tpu_custom_call.1} parent=1 // loop_footer_branch
      %18 = sbr.rel target = $region3
    $region8: #{tpu_custom_call.1} parent=1 // loop_exit
      _
    %703 = vsyncpa [#allocation3], 1
    %s704 = scalar_lea.sflag [#allocation3], 1
    %705 = vsyncpa %s704, 1
    %706 = vsyncpa [#allocation6], 1
    %707 = vsyncpa [#allocation4], 1
    %s708 = scalar_lea.sflag [#allocation4], 1
    %709 = vsyncpa %s708, 1

</llo_original>
